<compile_context>
chip_gen: v5e
topology: v5e:2x2
jax: 0.10.0
libtpu: 0.0.40
codegen_flags: <defaults>
</compile_context>

<pallas_src>
import jax
import jax.numpy as jnp
from jax import lax
from jax.experimental import pallas as pl
from jax.experimental.pallas import tpu as pltpu

N_EMBD = 64
N_HEADS = 4
HEAD_SIZE = N_EMBD // N_HEADS


def mha_kernel(
    x_ref,        # (BB, T, C)        f32 activations
    wqkv_ref,     # (H, C, 3*hs)      bf16 fused per-head Q|K|V weights (Q pre-scaled)
    wp_ref,       # (H, hs, C)        bf16 per-head row-slice of output projection
    bp_ref,       # (1, C)            f32 output projection bias
    o_ref,        # (BB, T, C)
):
    BB, T, C = x_ref.shape
    H = wqkv_ref.shape[0]
    hs = wqkv_ref.shape[2] // 3
    R = BB * T                       # matmul row dimension (all tokens in this batch tile)

    # --- fused Q/K/V projection -------------------------------------------------
    # Heads on the leading batch axis; each of the H batched MXU calls sees all BB*T rows.
    x2 = x_ref[...].astype(jnp.bfloat16).reshape(R, C)                 # (R, C)
    xh = jnp.broadcast_to(x2[None], (H, R, C))                         # (H, R, C)
    qkv = jnp.einsum("hrc,hcd->hrd", xh, wqkv_ref[...],
                     preferred_element_type=jnp.float32)               # (H, R, 3hs)

    # Per-(head, batch) attention views: leading-dim reshape only (lane dim unchanged).
    qkv = qkv.reshape(H * BB, T, 3 * hs)
    q = qkv[..., :hs]                # already scaled by n_embd**-0.5 via the weights
    k = qkv[..., hs:2 * hs]
    v = qkv[..., 2 * hs:]

    # --- scores + causal mask + softmax ------------------------------------------
    # Finite additive causal bias (avoids exp(-inf)/NaN on masked entries).
    row = lax.broadcasted_iota(jnp.int32, (T, T), 0)
    col = lax.broadcasted_iota(jnp.int32, (T, T), 1)
    causal_bias = jnp.where(row >= col, 0.0, -1e30).astype(jnp.float32)  # (T, T)

    s = jnp.einsum("bqd,bkd->bqk",
                   q.astype(jnp.bfloat16), k.astype(jnp.bfloat16),
                   preferred_element_type=jnp.float32)                  # (H*BB, T, T)
    s = s + causal_bias

    m = jnp.max(s, axis=-1, keepdims=True)
    p = jnp.exp(s - m)                                                  # EUP
    l = jnp.sum(p, axis=-1, keepdims=True)

    ctx = jnp.einsum("bqk,bkd->bqd",
                     p.astype(jnp.bfloat16), v.astype(jnp.bfloat16),
                     preferred_element_type=jnp.float32)                # (H*BB, T, hs)
    ctx = ctx * pl.reciprocal(l, approx=True)                           # normalize after PV

    # --- per-head output projection, sum over heads, bias ------------------------
    ctx = ctx.reshape(H, R, hs)                                         # leading-dim reshape
    y = jnp.einsum("hrd,hdc->hrc",
                   ctx.astype(jnp.bfloat16), wp_ref[...],
                   preferred_element_type=jnp.float32)                  # (H, R, C)
    y = y.sum(axis=0) + bp_ref[0]                                       # (R, C)

    # Output dropout = identity (eval mode).
    o_ref[...] = y.reshape(BB, T, C).astype(o_ref.dtype)


def multi_head_attention(x, params, *, batch_tile=None):
    """x: (B, T, C) float32.  params: wq/wk/wv/wp (C,C), bp (1,C).

    batch_tile=None -> whole batch in one grid step (best on v5e/v6e, 1 TensorCore).
    On v7x pass batch_tile=B//2 so the 'parallel' grid axis has >=2 steps (2 TensorCores).
    """
    B, T, C = x.shape
    H, hs = N_HEADS, HEAD_SIZE
    if batch_tile is None:
        batch_tile = B
    assert B % batch_tile == 0, "batch must be divisible by batch_tile"
    grid = (B // batch_tile,)

    # ---- wrapper-side weight packing (free, outside the kernel) ----
    def per_head_cols(w):                         # (C, C) -> (H, C, hs)
        return jnp.transpose(w.reshape(C, H, hs), (1, 0, 2))

    # Fold the n_embd**-0.5 score scale into the query weights (0.125 is a power of two,
    # exact under the bf16 cast).
    wq_scaled = params["wq"] * (float(C) ** (-0.5))
    wqkv_h = jnp.concatenate(
        [per_head_cols(wq_scaled),
         per_head_cols(params["wk"]),
         per_head_cols(params["wv"])], axis=-1).astype(jnp.bfloat16)       # (H, C, 3hs)
    wp_h = params["wp"].reshape(H, hs, C).astype(jnp.bfloat16)             # (H, hs, C)
    bp = params["bp"].astype(jnp.float32)                                  # (1, C)

    def full_spec(shape):
        return pl.BlockSpec(shape, lambda b: tuple(0 for _ in shape))

    in_specs = [
        pl.BlockSpec((batch_tile, T, C), lambda b: (b, 0, 0)),             # x
        full_spec((H, C, 3 * hs)),                                         # fused QKV
        full_spec((H, hs, C)),                                             # proj (per head)
        full_spec((1, C)),                                                 # proj bias
    ]

    flops = (2 * B * T * C * 3 * C      # QKV projection
             + 2 * B * T * T * C        # scores
             + 2 * B * T * T * C        # attention @ V
             + 2 * B * T * C * C)       # output projection
    bytes_accessed = (x.size * 4 + x.size * 4
                      + wqkv_h.size * 2 + wp_h.size * 2 + bp.size * 4)

    return pl.pallas_call(
        mha_kernel,
        out_shape=jax.ShapeDtypeStruct((B, T, C), x.dtype),
        grid_spec=pltpu.PrefetchScalarGridSpec(
            num_scalar_prefetch=0,
            grid=grid,
            in_specs=in_specs,
            out_specs=pl.BlockSpec((batch_tile, T, C), lambda b: (b, 0, 0)),
        ),
        compiler_params=pltpu.CompilerParams(
            dimension_semantics=("parallel",),
            vmem_limit_bytes=32 * 1024 * 1024,
        ),
        cost_estimate=pl.CostEstimate(
            flops=flops,
            transcendentals=B * H * T * T,
            bytes_accessed=bytes_accessed,
        ),
    )(x, wqkv_h, wp_h, bp)


def reference_mha(x, p):
    """Pure-JAX f32 reference matching the PyTorch module (eval-mode dropout)."""
    B, T, C = x.shape
    q = x @ p["wq"]; k = x @ p["wk"]; v = x @ p["wv"]
    mask = jnp.tril(jnp.ones((T, T), bool))
    outs = []
    for h in range(N_HEADS):
        s = slice(h * HEAD_SIZE, (h + 1) * HEAD_SIZE)
        wei = (q[..., s] @ jnp.swapaxes(k[..., s], -2, -1)) * (C ** -0.5)
        wei = jnp.where(mask, wei, -jnp.inf)
        wei = jax.nn.softmax(wei, axis=-1)
        outs.append(wei @ v[..., s])
    return jnp.concatenate(outs, axis=-1) @ p["wp"] + p["bp"]


def make_params(key, C=N_EMBD):
    ks = jax.random.split(key, 5)
    scale = 0.02
    return {
        "wq": scale * jax.random.normal(ks[0], (C, C), jnp.float32),
        "wk": scale * jax.random.normal(ks[1], (C, C), jnp.float32),
        "wv": scale * jax.random.normal(ks[2], (C, C), jnp.float32),
        "wp": scale * jax.random.normal(ks[3], (C, C), jnp.float32),
        "bp": scale * jax.random.normal(ks[4], (1, C), jnp.float32),
    }


if __name__ == "__main__":
    key = jax.random.PRNGKey(0)
    kx, kp = jax.random.split(key)

    B, T, C = 2, 8, N_EMBD            # T <= BLOCK_SIZE (128)
    x = jax.random.normal(kx, (B, T, C), jnp.float32)
    params = make_params(kp)

    out = multi_head_attention(x, params)
    out = jax.block_until_ready(out)

    ref = reference_mha(x, params)
    assert out.shape == (B, T, C)
    # bf16 MXU inputs + approx reciprocal -> compare against f32 reference with loose tolerance.
    max_err = float(jnp.max(jnp.abs(out - ref)))
    assert jnp.allclose(out, ref, rtol=2e-2, atol=2e-2), f"mismatch vs reference (max|err|={max_err})"

    print("KERNEL_OK")
</pallas_src>

<mosaic_0001>
module attributes {stable_mosaic.version = 11 : i64} {
  func.func @mha_kernel(%arg0: i32, %arg1: memref<2x8x64xf32, #tpu.memory_space<vmem>>, %arg2: memref<4x64x48xbf16, #tpu.memory_space<vmem>>, %arg3: memref<4x16x64xbf16, #tpu.memory_space<vmem>>, %arg4: memref<1x64xf32, #tpu.memory_space<vmem>>, %arg5: memref<2x8x64xf32, #tpu.memory_space<vmem>>) attributes {dimension_semantics = [#tpu.dimension_semantics<parallel>], iteration_bounds = array<i64: 1>, scalar_prefetch = 0 : i64, scratch_operands = 0 : i64, tpu.core_type = #tpu.core_type<tc>, window_params = [{transform_indices = @transform_0, window_bounds = array<i64: 2, 8, 64>}, {pipeline_mode = #tpu.pipeline_mode<synchronous>, transform_indices = @transform_1, window_bounds = array<i64: 4, 64, 48>}, {pipeline_mode = #tpu.pipeline_mode<synchronous>, transform_indices = @transform_2, window_bounds = array<i64: 4, 16, 64>}, {pipeline_mode = #tpu.pipeline_mode<synchronous>, transform_indices = @transform_3, window_bounds = array<i64: 1, 64>}, {transform_indices = @transform_4, window_bounds = array<i64: 2, 8, 64>}]} {
    %c0 = arith.constant 0 : index
    %c0_0 = arith.constant 0 : index
    %c0_1 = arith.constant 0 : index
    %0 = vector.load %arg1[%c0, %c0_0, %c0_1] : memref<2x8x64xf32, #tpu.memory_space<vmem>>, vector<2x8x64xf32>
    %1 = arith.truncf %0 : vector<2x8x64xf32> to vector<2x8x64xbf16>
    %2 = vector.shape_cast %1 : vector<2x8x64xbf16> to vector<16x64xbf16>
    %3 = vector.shape_cast %2 : vector<16x64xbf16> to vector<1x16x64xbf16>
    %4 = vector.shape_cast %3 : vector<1x16x64xbf16> to vector<1x16x64xbf16>
    %5 = vector.broadcast %4 : vector<1x16x64xbf16> to vector<4x16x64xbf16>
    %c0_2 = arith.constant 0 : index
    %c0_3 = arith.constant 0 : index
    %c0_4 = arith.constant 0 : index
    %6 = vector.load %arg2[%c0_2, %c0_3, %c0_4] : memref<4x64x48xbf16, #tpu.memory_space<vmem>>, vector<4x64x48xbf16>
    "tpu.trace_start"() <{level = 10 : i32, message = "hrc,hcd->hrd"}> : () -> ()
    %cst = arith.constant dense<0.000000e+00> : vector<4x16x48xf32>
    %7 = tpu.matmul %5, %6, %cst {dimension_numbers = #tpu.dot_dimension_numbers<[2], [1], [1], [2], [0, 0, 0, 1, 1, 2], [0], [0]>} : vector<4x16x64xbf16>, vector<4x64x48xbf16>, vector<4x16x48xf32> -> vector<4x16x48xf32>
    "tpu.trace_stop"() : () -> ()
    %8 = vector.shape_cast %7 : vector<4x16x48xf32> to vector<8x8x48xf32>
    %9 = vector.extract_strided_slice %8 {offsets = [0, 0, 0], sizes = [8, 8, 16], strides = [1, 1, 1]} : vector<8x8x48xf32> to vector<8x8x16xf32>
    %10 = vector.extract_strided_slice %8 {offsets = [0, 0, 16], sizes = [8, 8, 16], strides = [1, 1, 1]} : vector<8x8x48xf32> to vector<8x8x16xf32>
    %11 = vector.extract_strided_slice %8 {offsets = [0, 0, 32], sizes = [8, 8, 16], strides = [1, 1, 1]} : vector<8x8x48xf32> to vector<8x8x16xf32>
    %12 = tpu.iota {dimensions = array<i32: 0>} : vector<8x8xi32>
    %13 = tpu.iota {dimensions = array<i32: 1>} : vector<8x8xi32>
    %14 = arith.cmpi sge, %12, %13 : vector<8x8xi32>
    %cst_5 = arith.constant 0.000000e+00 : f32
    %cst_6 = arith.constant -1.000000e+30 : f32
    %15 = vector.broadcast %cst_5 : f32 to vector<8x8xf32>
    %16 = vector.broadcast %cst_6 : f32 to vector<8x8xf32>
    %17 = arith.select %14, %15, %16 : vector<8x8xi1>, vector<8x8xf32>
    %18 = arith.truncf %9 : vector<8x8x16xf32> to vector<8x8x16xbf16>
    %19 = arith.truncf %10 : vector<8x8x16xf32> to vector<8x8x16xbf16>
    "tpu.trace_start"() <{level = 10 : i32, message = "bqd,bkd->bqk"}> : () -> ()
    %cst_7 = arith.constant dense<0.000000e+00> : vector<8x8x8xf32>
    %20 = tpu.matmul %18, %19, %cst_7 {dimension_numbers = #tpu.dot_dimension_numbers<[2], [2], [1], [1], [0, 0, 0, 1, 1, 1], [0], [0]>} : vector<8x8x16xbf16>, vector<8x8x16xbf16>, vector<8x8x8xf32> -> vector<8x8x8xf32>
    "tpu.trace_stop"() : () -> ()
    %21 = vector.shape_cast %17 : vector<8x8xf32> to vector<1x8x8xf32>
    %22 = vector.broadcast %21 : vector<1x8x8xf32> to vector<8x8x8xf32>
    %23 = arith.addf %20, %22 : vector<8x8x8xf32>
    %cst_8 = arith.constant dense<0xFF800000> : vector<8x8xf32>
    %24 = vector.multi_reduction <maximumf>, %23, %cst_8 [2] : vector<8x8x8xf32> to vector<8x8xf32>
    %25 = vector.shape_cast %24 : vector<8x8xf32> to vector<8x8x1xf32>
    %26 = vector.broadcast %25 : vector<8x8x1xf32> to vector<8x8x8xf32>
    %27 = arith.subf %23, %26 : vector<8x8x8xf32>
    %28 = math.exp %27 : vector<8x8x8xf32>
    %cst_9 = arith.constant dense<0.000000e+00> : vector<8x8xf32>
    %29 = vector.multi_reduction <add>, %28, %cst_9 [2] : vector<8x8x8xf32> to vector<8x8xf32>
    %30 = vector.shape_cast %29 : vector<8x8xf32> to vector<8x8x1xf32>
    %31 = arith.truncf %28 : vector<8x8x8xf32> to vector<8x8x8xbf16>
    %32 = arith.truncf %11 : vector<8x8x16xf32> to vector<8x8x16xbf16>
    "tpu.trace_start"() <{level = 10 : i32, message = "bqk,bkd->bqd"}> : () -> ()
    %cst_10 = arith.constant dense<0.000000e+00> : vector<8x8x16xf32>
    %33 = tpu.matmul %31, %32, %cst_10 {dimension_numbers = #tpu.dot_dimension_numbers<[2], [1], [1], [2], [0, 0, 0, 1, 1, 2], [0], [0]>} : vector<8x8x8xbf16>, vector<8x8x16xbf16>, vector<8x8x16xf32> -> vector<8x8x16xf32>
    "tpu.trace_stop"() : () -> ()
    %34 = tpu.reciprocal %30 {approx = true} : vector<8x8x1xf32> -> vector<8x8x1xf32>
    %35 = vector.broadcast %34 : vector<8x8x1xf32> to vector<8x8x16xf32>
    %36 = arith.mulf %33, %35 : vector<8x8x16xf32>
    %37 = vector.shape_cast %36 : vector<8x8x16xf32> to vector<4x16x16xf32>
    %38 = arith.truncf %37 : vector<4x16x16xf32> to vector<4x16x16xbf16>
    %c0_11 = arith.constant 0 : index
    %c0_12 = arith.constant 0 : index
    %c0_13 = arith.constant 0 : index
    %39 = vector.load %arg3[%c0_11, %c0_12, %c0_13] : memref<4x16x64xbf16, #tpu.memory_space<vmem>>, vector<4x16x64xbf16>
    "tpu.trace_start"() <{level = 10 : i32, message = "hrd,hdc->hrc"}> : () -> ()
    %cst_14 = arith.constant dense<0.000000e+00> : vector<4x16x64xf32>
    %40 = tpu.matmul %38, %39, %cst_14 {dimension_numbers = #tpu.dot_dimension_numbers<[2], [1], [1], [2], [0, 0, 0, 1, 1, 2], [0], [0]>} : vector<4x16x16xbf16>, vector<4x16x64xbf16>, vector<4x16x64xf32> -> vector<4x16x64xf32>
    "tpu.trace_stop"() : () -> ()
    %cst_15 = arith.constant dense<0.000000e+00> : vector<16x64xf32>
    %41 = vector.multi_reduction <add>, %40, %cst_15 [0] : vector<4x16x64xf32> to vector<16x64xf32>
    %c0_16 = arith.constant 0 : index
    %c0_17 = arith.constant 0 : index
    %42 = vector.load %arg4[%c0_16, %c0_17] : memref<1x64xf32, #tpu.memory_space<vmem>>, vector<1x64xf32>
    %43 = vector.shape_cast %42 : vector<1x64xf32> to vector<64xf32>
    %44 = vector.shape_cast %43 : vector<64xf32> to vector<1x64xf32>
    %45 = vector.broadcast %44 : vector<1x64xf32> to vector<16x64xf32>
    %46 = arith.addf %41, %45 : vector<16x64xf32>
    %47 = vector.shape_cast %46 : vector<16x64xf32> to vector<2x8x64xf32>
    %c0_18 = arith.constant 0 : index
    %c0_19 = arith.constant 0 : index
    %c0_20 = arith.constant 0 : index
    %48 = vector.load %arg5[%c0_18, %c0_19, %c0_20] : memref<2x8x64xf32, #tpu.memory_space<vmem>>, vector<2x8x64xf32>
    tpu.vector_store %arg5[%c0_18, %c0_19, %c0_20], %47 {strides = array<i32>} : memref<2x8x64xf32, #tpu.memory_space<vmem>>, vector<2x8x64xf32>,
    return
  }
  func.func @transform_0(%arg0: i32) -> (i32, i32, i32) {
    %c0_i32 = arith.constant 0 : i32
    %c0_i32_0 = arith.constant 0 : i32
    %c0_i32_1 = arith.constant 0 : i32
    return %arg0, %c0_i32, %c0_i32_0 : i32, i32, i32
  }
  func.func @transform_1(%arg0: i32) -> (i32, i32, i32) {
    %c0_i32 = arith.constant 0 : i32
    %c0_i32_0 = arith.constant 0 : i32
    %c0_i32_1 = arith.constant 0 : i32
    %c0_i32_2 = arith.constant 0 : i32
    return %c0_i32, %c0_i32_0, %c0_i32_1 : i32, i32, i32
  }
  func.func @transform_2(%arg0: i32) -> (i32, i32, i32) {
    %c0_i32 = arith.constant 0 : i32
    %c0_i32_0 = arith.constant 0 : i32
    %c0_i32_1 = arith.constant 0 : i32
    %c0_i32_2 = arith.constant 0 : i32
    return %c0_i32, %c0_i32_0, %c0_i32_1 : i32, i32, i32
  }
  func.func @transform_3(%arg0: i32) -> (i32, i32) {
    %c0_i32 = arith.constant 0 : i32
    %c0_i32_0 = arith.constant 0 : i32
    %c0_i32_1 = arith.constant 0 : i32
    return %c0_i32, %c0_i32_0 : i32, i32
  }
  func.func @transform_4(%arg0: i32) -> (i32, i32, i32) {
    %c0_i32 = arith.constant 0 : i32
    %c0_i32_0 = arith.constant 0 : i32
    %c0_i32_1 = arith.constant 0 : i32
    return %arg0, %c0_i32, %c0_i32_0 : i32, i32, i32
  }
}

</mosaic_0001>

<llo_original>
// kernel: tpu_custom_call.1
$region0: #{tpu_custom_call.1}
  #allocation0 [shape = 'u32[]', space=smem, size = 0x4, offset = 0x4, fixed_abs, tag = 'smem constant byte address 0x4 - core index']
  #allocation1 [shape = 'u32[72,128]{1,0:T(1,128)}', space=vmem, size = 0x9000, scoped, tag = 'internal scratch']
  %s0 = inlined_call_operand.vmem [shape: f32[2,8,64], index: 0, kind: input, shape index: {}]
  %s1 = inlined_call_operand.vmem [shape: bf16[4,64,48], index: 1, kind: input, shape index: {}]
  %s2 = inlined_call_operand.vmem [shape: bf16[4,16,64], index: 2, kind: input, shape index: {}]
  %s3 = inlined_call_operand.vmem [shape: f32[1,64], index: 3, kind: input, shape index: {}]
  %s4 = inlined_call_operand.hbm [shape: f32[2,8,64], index: 4, kind: output, shape index: {}]
  %s5 = sld [smem:[#allocation0]]
  $region26: #{tpu_custom_call.1} parent=0
    _
  %s7 = ssub.s32 1, %s5
  %s8 = scalar_select 0, %s7, %s5
  $region1: #{tpu_custom_call.1} parent=0
    #allocation2 [shape = 'u8[8192]{0}', space=vmem, size = 0x2000, scoped, tag = 'output window, operand 0, single buffered']
    #allocation3 [shape = 's32[1]{0}', space=sflag, size = 0x4, scoped, tag = 'scoped memory for tpu_custom_call.1']
    %9 = vsyncpa [#allocation3], 0
    // Predicated region
    $region2: #{tpu_custom_call.1} parent=1 // pred_check
      _
    $region3: #{tpu_custom_call.1} parent=1 // pred_check_branch
      %11 = sbr.rel (0) target = $region5
    $region4: #{tpu_custom_call.1} parent=1 // pred_region
      _
    $region5: #{tpu_custom_call.1} parent=1 // pred_fallthru
      _
    // Predicated region
    $region6: #{tpu_custom_call.1} parent=1 // pred_check
      _
    $region7: #{tpu_custom_call.1} parent=1 // pred_check_branch
      %13 = sbr.rel (0) target = $region9
    $region8: #{tpu_custom_call.1} parent=1 // pred_region
      _
    $region9: #{tpu_custom_call.1} parent=1 // pred_fallthru
      _
    // Predicated region
    $region10: #{tpu_custom_call.1} parent=1 // pred_check
      _
    $region11: #{tpu_custom_call.1} parent=1 // pred_check_branch
      %15 = sbr.rel (0) target = $region13
    $region12: #{tpu_custom_call.1} parent=1 // pred_region
      _
    $region13: #{tpu_custom_call.1} parent=1 // pred_fallthru
      _
    // Predicated region
    $region14: #{tpu_custom_call.1} parent=1 // pred_check
      _
    $region15: #{tpu_custom_call.1} parent=1 // pred_check_branch
      %17 = sbr.rel (0) target = $region17
    $region16: #{tpu_custom_call.1} parent=1 // pred_region
      _
    $region17: #{tpu_custom_call.1} parent=1 // pred_fallthru
      _
    %v19 = vld [vmem:[%s0] sm:$0xff]
    %v20 = vld [vmem:[%s0 + $0x8] sm:$0xff]
    %v21 = vpack.c.bf16 %v19, %v19
    %v22 = vpack.c.bf16 %v20, %v20
    %v23 = vld [vmem:[%s1] sm:$0xf]
    %v24 = vld [vmem:[%s1 + $0x4] sm:$0xf]
    %v25 = vld [vmem:[%s1 + $0x8] sm:$0xf]
    %v26 = vld [vmem:[%s1 + $0xc] sm:$0xf]
    %v27 = vld [vmem:[%s1 + $0x10] sm:$0xf]
    %v28 = vld [vmem:[%s1 + $0x14] sm:$0xf]
    %v29 = vld [vmem:[%s1 + $0x18] sm:$0xf]
    %v30 = vld [vmem:[%s1 + $0x1c] sm:$0xf]
    %v31 = vld [vmem:[%s1 + $0x20] sm:$0xf]
    %v32 = vld [vmem:[%s1 + $0x24] sm:$0xf]
    %v33 = vld [vmem:[%s1 + $0x28] sm:$0xf]
    %v34 = vld [vmem:[%s1 + $0x2c] sm:$0xf]
    %v35 = vld [vmem:[%s1 + $0x30] sm:$0xf]
    %v36 = vld [vmem:[%s1 + $0x34] sm:$0xf]
    %v37 = vld [vmem:[%s1 + $0x38] sm:$0xf]
    %v38 = vld [vmem:[%s1 + $0x3c] sm:$0xf]
    %v39 = vld [vmem:[%s1 + $0x40] sm:$0xf]
    %v40 = vld [vmem:[%s1 + $0x44] sm:$0xf]
    %v41 = vld [vmem:[%s1 + $0x48] sm:$0xf]
    %v42 = vld [vmem:[%s1 + $0x4c] sm:$0xf]
    %v43 = vld [vmem:[%s1 + $0x50] sm:$0xf]
    %v44 = vld [vmem:[%s1 + $0x54] sm:$0xf]
    %v45 = vld [vmem:[%s1 + $0x58] sm:$0xf]
    %v46 = vld [vmem:[%s1 + $0x5c] sm:$0xf]
    %v47 = vld [vmem:[%s1 + $0x60] sm:$0xf]
    %v48 = vld [vmem:[%s1 + $0x64] sm:$0xf]
    %v49 = vld [vmem:[%s1 + $0x68] sm:$0xf]
    %v50 = vld [vmem:[%s1 + $0x6c] sm:$0xf]
    %v51 = vld [vmem:[%s1 + $0x70] sm:$0xf]
    %v52 = vld [vmem:[%s1 + $0x74] sm:$0xf]
    %v53 = vld [vmem:[%s1 + $0x78] sm:$0xf]
    %v54 = vld [vmem:[%s1 + $0x7c] sm:$0xf]
    %v57 = vunpack.c.l.b16 %v21
    %v58 = vunpack.c.l.b16 %v22
    %v59 = vpack.c.b16 %v58, %v57
    %v68 = vunpack.c.l.b16 %v23
    %v69 = vunpack.c.l.b16 %v24
    %v70 = vunpack.c.l.b16 %v25
    %v71 = vunpack.c.l.b16 %v26
    %v72 = vunpack.c.l.b16 %v27
    %v73 = vunpack.c.l.b16 %v28
    %v74 = vunpack.c.l.b16 %v29
    %v75 = vunpack.c.l.b16 %v30
    %v76 = vpack.c.b16 %v69, %v68
    %v77 = vpack.c.b16 %v71, %v70
    %v78 = vpack.c.b16 %v73, %v72
    %v79 = vpack.c.b16 %v75, %v74
    %vm84 = vcmask 523264
    %v86 = vsel %vm84, %v59, 0
    %88 = vmatpush.bf16.msra.mxu0 0
    %89 = vmatpush.bf16.msra.mxu0 0
    %90 = vmatpush.bf16.msra.mxu0 0
    %91 = vmatpush.bf16.msra.mxu0 0
    %92 = vmatpush.bf16.msra.mxu0 %v79
    %93 = vmatpush.bf16.msra.mxu0 %v78
    %94 = vmatpush.bf16.msra.mxu0 %v77
    %95 = vmatpush.bf16.msra.mxu0 %v76
    %96 = vmatmul.bf16.gmra.mxu0 %v86
    %v97 = vpop.f32.mrf.mxu0
    %v98 = vadd.f32 0.0, %v97
    %v99 = vpop.f32.mrf.mxu0
    %v100 = vadd.f32 0.0, %v99
    %101 = vdwg.mxu0
    %v110 = vunpack.c.l.b16 %v31
    %v111 = vunpack.c.l.b16 %v32
    %v112 = vunpack.c.l.b16 %v33
    %v113 = vunpack.c.l.b16 %v34
    %v114 = vunpack.c.l.b16 %v35
    %v115 = vunpack.c.l.b16 %v36
    %v116 = vunpack.c.l.b16 %v37
    %v117 = vunpack.c.l.b16 %v38
    %v118 = vpack.c.b16 %v111, %v110
    %v119 = vpack.c.b16 %v113, %v112
    %v120 = vpack.c.b16 %v115, %v114
    %v121 = vpack.c.b16 %v117, %v116
    %126 = vmatpush.bf16.msra.mxu0 0
    %127 = vmatpush.bf16.msra.mxu0 0
    %128 = vmatpush.bf16.msra.mxu0 0
    %129 = vmatpush.bf16.msra.mxu0 0
    %130 = vmatpush.bf16.msra.mxu0 %v121
    %131 = vmatpush.bf16.msra.mxu0 %v120
    %132 = vmatpush.bf16.msra.mxu0 %v119
    %133 = vmatpush.bf16.msra.mxu0 %v118
    %134 = vmatmul.bf16.gmra.mxu0 %v86
    %v135 = vpop.f32.mrf.mxu0
    %v136 = vadd.f32 0.0, %v135
    %v137 = vpop.f32.mrf.mxu0
    %v138 = vadd.f32 0.0, %v137
    %139 = vdwg.mxu0
    %v148 = vunpack.c.l.b16 %v39
    %v149 = vunpack.c.l.b16 %v40
    %v150 = vunpack.c.l.b16 %v41
    %v151 = vunpack.c.l.b16 %v42
    %v152 = vunpack.c.l.b16 %v43
    %v153 = vunpack.c.l.b16 %v44
    %v154 = vunpack.c.l.b16 %v45
    %v155 = vunpack.c.l.b16 %v46
    %v156 = vpack.c.b16 %v149, %v148
    %v157 = vpack.c.b16 %v151, %v150
    %v158 = vpack.c.b16 %v153, %v152
    %v159 = vpack.c.b16 %v155, %v154
    %164 = vmatpush.bf16.msra.mxu0 0
    %165 = vmatpush.bf16.msra.mxu0 0
    %166 = vmatpush.bf16.msra.mxu0 0
    %167 = vmatpush.bf16.msra.mxu0 0
    %168 = vmatpush.bf16.msra.mxu0 %v159
    %169 = vmatpush.bf16.msra.mxu0 %v158
    %170 = vmatpush.bf16.msra.mxu0 %v157
    %171 = vmatpush.bf16.msra.mxu0 %v156
    %172 = vmatmul.bf16.gmra.mxu0 %v86
    %v173 = vpop.f32.mrf.mxu0
    %v174 = vadd.f32 0.0, %v173
    %v175 = vpop.f32.mrf.mxu0
    %v176 = vadd.f32 0.0, %v175
    %177 = vdwg.mxu0
    %v186 = vunpack.c.l.b16 %v47
    %v187 = vunpack.c.l.b16 %v48
    %v188 = vunpack.c.l.b16 %v49
    %v189 = vunpack.c.l.b16 %v50
    %v190 = vunpack.c.l.b16 %v51
    %v191 = vunpack.c.l.b16 %v52
    %v192 = vunpack.c.l.b16 %v53
    %v193 = vunpack.c.l.b16 %v54
    %v194 = vpack.c.b16 %v187, %v186
    %v195 = vpack.c.b16 %v189, %v188
    %v196 = vpack.c.b16 %v191, %v190
    %v197 = vpack.c.b16 %v193, %v192
    %202 = vmatpush.bf16.msra.mxu0 0
    %203 = vmatpush.bf16.msra.mxu0 0
    %204 = vmatpush.bf16.msra.mxu0 0
    %205 = vmatpush.bf16.msra.mxu0 0
    %206 = vmatpush.bf16.msra.mxu0 %v197
    %207 = vmatpush.bf16.msra.mxu0 %v196
    %208 = vmatpush.bf16.msra.mxu0 %v195
    %209 = vmatpush.bf16.msra.mxu0 %v194
    %210 = vmatmul.bf16.gmra.mxu0 %v86
    %v211 = vpop.f32.mrf.mxu0
    %v212 = vadd.f32 0.0, %v211
    %v213 = vpop.f32.mrf.mxu0
    %v214 = vadd.f32 0.0, %v213
    %215 = vdwg.mxu0
    %v216 = vlaneseq
    %v217 = vshrl.u32 %v216, 7
    %v218 = vlaneseq
    %v219 = vand.u32 %v218, 127
    %vm220 = vcmp.ge.s32.totalorder %v217, %v219
    %v221 = vsel %vm220, 0.0, -1e+30
    %v222 = vpack.c.bf16 %v98, %v98
    %v223 = vpack.c.bf16 %v100, %v100
    %v224 = vpack.c.bf16 %v136, %v136
    %v225 = vpack.c.bf16 %v138, %v138
    %v226 = vpack.c.bf16 %v174, %v174
    %v227 = vpack.c.bf16 %v176, %v176
    %v228 = vpack.c.bf16 %v212, %v212
    %v229 = vpack.c.bf16 %v214, %v214
    %v231 = vunpack.c.l.b16 %v222
    %v232 = vpack.c.b16 %v231, %v231
    %233 = vrot.lane.b32.xlu0 %v232, 112
    %v234 = vpop.permute.xlu0 %233
    %vm235 = vcmask 130048
    %v237 = vsel %vm235, %v222, 0
    %v240 = vsel %vm235, %v234, 0
    %242 = vmatpush.bf16.xpose.msra.mxu0 0
    %243 = vmatpush.bf16.xpose.msra.mxu0 0
    %244 = vmatpush.bf16.xpose.msra.mxu0 0
    %245 = vmatpush.bf16.xpose.msra.mxu0 0
    %246 = vmatpush.bf16.xpose.msra.mxu0 0
    %247 = vmatpush.bf16.xpose.msra.mxu0 0
    %248 = vmatpush.bf16.xpose.msra.mxu0 0
    %249 = vmatpush.bf16.xpose.msra.mxu0 %v240
    %250 = vmatmul.bf16.gmra.mxu0 %v237
    %v251 = vpop.f32.mrf.mxu0
    %v252 = vadd.f32 %v221, %v251
    %v253 = vpop.f32.mrf.mxu0
    %254 = vdwg.mxu0
    %v256 = vunpack.c.l.b16 %v223
    %v257 = vpack.c.b16 %v256, %v256
    %258 = vrot.lane.b32.xlu0 %v257, 112
    %v259 = vpop.permute.xlu0 %258
    %v261 = vsel %vm235, %v223, 0
    %v264 = vsel %vm235, %v259, 0
    %266 = vmatpush.bf16.xpose.msra.mxu0 0
    %267 = vmatpush.bf16.xpose.msra.mxu0 0
    %268 = vmatpush.bf16.xpose.msra.mxu0 0
    %269 = vmatpush.bf16.xpose.msra.mxu0 0
    %270 = vmatpush.bf16.xpose.msra.mxu0 0
    %271 = vmatpush.bf16.xpose.msra.mxu0 0
    %272 = vmatpush.bf16.xpose.msra.mxu0 0
    %273 = vmatpush.bf16.xpose.msra.mxu0 %v264
    %274 = vmatmul.bf16.gmra.mxu0 %v261
    %v275 = vpop.f32.mrf.mxu0
    %v276 = vadd.f32 %v221, %v275
    %v277 = vpop.f32.mrf.mxu0
    %278 = vdwg.mxu0
    %v280 = vunpack.c.l.b16 %v224
    %v281 = vpack.c.b16 %v280, %v280
    %282 = vrot.lane.b32.xlu0 %v281, 112
    %v283 = vpop.permute.xlu0 %282
    %v285 = vsel %vm235, %v224, 0
    %v288 = vsel %vm235, %v283, 0
    %290 = vmatpush.bf16.xpose.msra.mxu0 0
    %291 = vmatpush.bf16.xpose.msra.mxu0 0
    %292 = vmatpush.bf16.xpose.msra.mxu0 0
    %293 = vmatpush.bf16.xpose.msra.mxu0 0
    %294 = vmatpush.bf16.xpose.msra.mxu0 0
    %295 = vmatpush.bf16.xpose.msra.mxu0 0
    %296 = vmatpush.bf16.xpose.msra.mxu0 0
    %297 = vmatpush.bf16.xpose.msra.mxu0 %v288
    %298 = vmatmul.bf16.gmra.mxu0 %v285
    %v299 = vpop.f32.mrf.mxu0
    %v300 = vadd.f32 %v221, %v299
    %v301 = vpop.f32.mrf.mxu0
    %302 = vdwg.mxu0
    %v304 = vunpack.c.l.b16 %v225
    %v305 = vpack.c.b16 %v304, %v304
    %306 = vrot.lane.b32.xlu0 %v305, 112
    %v307 = vpop.permute.xlu0 %306
    %v309 = vsel %vm235, %v225, 0
    %v312 = vsel %vm235, %v307, 0
    %314 = vmatpush.bf16.xpose.msra.mxu0 0
    %315 = vmatpush.bf16.xpose.msra.mxu0 0
    %316 = vmatpush.bf16.xpose.msra.mxu0 0
    %317 = vmatpush.bf16.xpose.msra.mxu0 0
    %318 = vmatpush.bf16.xpose.msra.mxu0 0
    %319 = vmatpush.bf16.xpose.msra.mxu0 0
    %320 = vmatpush.bf16.xpose.msra.mxu0 0
    %321 = vmatpush.bf16.xpose.msra.mxu0 %v312
    %322 = vmatmul.bf16.gmra.mxu0 %v309
    %v323 = vpop.f32.mrf.mxu0
    %v324 = vadd.f32 %v221, %v323
    %v325 = vpop.f32.mrf.mxu0
    %326 = vdwg.mxu0
    %v328 = vunpack.c.l.b16 %v226
    %v329 = vpack.c.b16 %v328, %v328
    %330 = vrot.lane.b32.xlu0 %v329, 112
    %v331 = vpop.permute.xlu0 %330
    %v333 = vsel %vm235, %v226, 0
    %v336 = vsel %vm235, %v331, 0
    %338 = vmatpush.bf16.xpose.msra.mxu0 0
    %339 = vmatpush.bf16.xpose.msra.mxu0 0
    %340 = vmatpush.bf16.xpose.msra.mxu0 0
    %341 = vmatpush.bf16.xpose.msra.mxu0 0
    %342 = vmatpush.bf16.xpose.msra.mxu0 0
    %343 = vmatpush.bf16.xpose.msra.mxu0 0
    %344 = vmatpush.bf16.xpose.msra.mxu0 0
    %345 = vmatpush.bf16.xpose.msra.mxu0 %v336
    %346 = vmatmul.bf16.gmra.mxu0 %v333
    %v347 = vpop.f32.mrf.mxu0
    %v348 = vadd.f32 %v221, %v347
    %v349 = vpop.f32.mrf.mxu0
    %350 = vdwg.mxu0
    %v352 = vunpack.c.l.b16 %v227
    %v353 = vpack.c.b16 %v352, %v352
    %354 = vrot.lane.b32.xlu0 %v353, 112
    %v355 = vpop.permute.xlu0 %354
    %v357 = vsel %vm235, %v227, 0
    %v360 = vsel %vm235, %v355, 0
    %362 = vmatpush.bf16.xpose.msra.mxu0 0
    %363 = vmatpush.bf16.xpose.msra.mxu0 0
    %364 = vmatpush.bf16.xpose.msra.mxu0 0
    %365 = vmatpush.bf16.xpose.msra.mxu0 0
    %366 = vmatpush.bf16.xpose.msra.mxu0 0
    %367 = vmatpush.bf16.xpose.msra.mxu0 0
    %368 = vmatpush.bf16.xpose.msra.mxu0 0
    %369 = vmatpush.bf16.xpose.msra.mxu0 %v360
    %370 = vmatmul.bf16.gmra.mxu0 %v357
    %v371 = vpop.f32.mrf.mxu0
    %v372 = vadd.f32 %v221, %v371
    %v373 = vpop.f32.mrf.mxu0
    %374 = vdwg.mxu0
    %v376 = vunpack.c.l.b16 %v228
    %v377 = vpack.c.b16 %v376, %v376
    %378 = vrot.lane.b32.xlu0 %v377, 112
    %v379 = vpop.permute.xlu0 %378
    %v381 = vsel %vm235, %v228, 0
    %v384 = vsel %vm235, %v379, 0
    %386 = vmatpush.bf16.xpose.msra.mxu0 0
    %387 = vmatpush.bf16.xpose.msra.mxu0 0
    %388 = vmatpush.bf16.xpose.msra.mxu0 0
    %389 = vmatpush.bf16.xpose.msra.mxu0 0
    %390 = vmatpush.bf16.xpose.msra.mxu0 0
    %391 = vmatpush.bf16.xpose.msra.mxu0 0
    %392 = vmatpush.bf16.xpose.msra.mxu0 0
    %393 = vmatpush.bf16.xpose.msra.mxu0 %v384
    %394 = vmatmul.bf16.gmra.mxu0 %v381
    %v395 = vpop.f32.mrf.mxu0
    %v396 = vadd.f32 %v221, %v395
    %v397 = vpop.f32.mrf.mxu0
    %398 = vdwg.mxu0
    %v400 = vunpack.c.l.b16 %v229
    %v401 = vpack.c.b16 %v400, %v400
    %402 = vrot.lane.b32.xlu0 %v401, 112
    %v403 = vpop.permute.xlu0 %402
    %v405 = vsel %vm235, %v229, 0
    %v408 = vsel %vm235, %v403, 0
    %410 = vmatpush.bf16.xpose.msra.mxu0 0
    %411 = vmatpush.bf16.xpose.msra.mxu0 0
    %412 = vmatpush.bf16.xpose.msra.mxu0 0
    %413 = vmatpush.bf16.xpose.msra.mxu0 0
    %414 = vmatpush.bf16.xpose.msra.mxu0 0
    %415 = vmatpush.bf16.xpose.msra.mxu0 0
    %416 = vmatpush.bf16.xpose.msra.mxu0 0
    %417 = vmatpush.bf16.xpose.msra.mxu0 %v408
    %418 = vmatmul.bf16.gmra.mxu0 %v405
    %v419 = vpop.f32.mrf.mxu0
    %v420 = vadd.f32 %v221, %v419
    %v421 = vpop.f32.mrf.mxu0
    %422 = vdwg.mxu0
    %vm423 = vcmask 64512
    %v424 = vsel %vm423, %v252, -inf
    %425 = vmax.xlane.f32.xlu0 %v424
    %v426 = vpop.xlane.xlu0 %425
    %v427 = vsel %vm423, %v276, -inf
    %428 = vmax.xlane.f32.xlu0 %v427
    %v429 = vpop.xlane.xlu0 %428
    %v430 = vsel %vm423, %v300, -inf
    %431 = vmax.xlane.f32.xlu0 %v430
    %v432 = vpop.xlane.xlu0 %431
    %v433 = vsel %vm423, %v324, -inf
    %434 = vmax.xlane.f32.xlu0 %v433
    %v435 = vpop.xlane.xlu0 %434
    %v436 = vsel %vm423, %v348, -inf
    %437 = vmax.xlane.f32.xlu0 %v436
    %v438 = vpop.xlane.xlu0 %437
    %v439 = vsel %vm423, %v372, -inf
    %440 = vmax.xlane.f32.xlu0 %v439
    %v441 = vpop.xlane.xlu0 %440
    %v442 = vsel %vm423, %v396, -inf
    %443 = vmax.xlane.f32.xlu0 %v442
    %v444 = vpop.xlane.xlu0 %443
    %v445 = vsel %vm423, %v420, -inf
    %446 = vmax.xlane.f32.xlu0 %v445
    %v447 = vpop.xlane.xlu0 %446
    %v448 = vsub.f32 %v252, %v426
    %v449 = vsub.f32 %v276, %v429
    %v450 = vsub.f32 %v300, %v432
    %v451 = vsub.f32 %v324, %v435
    %v452 = vsub.f32 %v348, %v438
    %v453 = vsub.f32 %v372, %v441
    %v454 = vsub.f32 %v396, %v444
    %v455 = vsub.f32 %v420, %v447
    %v456 = vmul.f32 %v448, 1.442695
    %v457 = vpow.pop %v456
    %v458 = vmul.f32 %v449, 1.442695
    %v459 = vpow.pop %v458
    %v460 = vmul.f32 %v450, 1.442695
    %v461 = vpow.pop %v460
    %v462 = vmul.f32 %v451, 1.442695
    %v463 = vpow.pop %v462
    %v464 = vmul.f32 %v452, 1.442695
    %v465 = vpow.pop %v464
    %v466 = vmul.f32 %v453, 1.442695
    %v467 = vpow.pop %v466
    %v468 = vmul.f32 %v454, 1.442695
    %v469 = vpow.pop %v468
    %v470 = vmul.f32 %v455, 1.442695
    %v471 = vpow.pop %v470
    %v472 = vsel %vm423, %v457, 0.0
    %473 = vadd.xlane.f32.xlu0 %v472
    %v474 = vpop.xlane.xlu0 %473
    %v475 = vsel %vm423, %v459, 0.0
    %476 = vadd.xlane.f32.xlu0 %v475
    %v477 = vpop.xlane.xlu0 %476
    %v478 = vsel %vm423, %v461, 0.0
    %479 = vadd.xlane.f32.xlu0 %v478
    %v480 = vpop.xlane.xlu0 %479
    %v481 = vsel %vm423, %v463, 0.0
    %482 = vadd.xlane.f32.xlu0 %v481
    %v483 = vpop.xlane.xlu0 %482
    %v484 = vsel %vm423, %v465, 0.0
    %485 = vadd.xlane.f32.xlu0 %v484
    %v486 = vpop.xlane.xlu0 %485
    %v487 = vsel %vm423, %v467, 0.0
    %488 = vadd.xlane.f32.xlu0 %v487
    %v489 = vpop.xlane.xlu0 %488
    %v490 = vsel %vm423, %v469, 0.0
    %491 = vadd.xlane.f32.xlu0 %v490
    %v492 = vpop.xlane.xlu0 %491
    %v493 = vsel %vm423, %v471, 0.0
    %494 = vadd.xlane.f32.xlu0 %v493
    %v495 = vpop.xlane.xlu0 %494
    %v496 = vpack.c.bf16 %v457, %v457
    %v497 = vpack.c.bf16 %v459, %v459
    %v498 = vpack.c.bf16 %v461, %v461
    %v499 = vpack.c.bf16 %v463, %v463
    %v500 = vpack.c.bf16 %v465, %v465
    %v501 = vpack.c.bf16 %v467, %v467
    %v502 = vpack.c.bf16 %v469, %v469
    %v503 = vpack.c.bf16 %v471, %v471
    %504 = vrot.lane.b32.xlu0 %v232, 96
    %v505 = vpop.permute.xlu0 %504
    %v507 = vsel %vm423, %v496, 0
    %vm509 = vcmask 1043456
    %v511 = vsel %vm509, %v505, 0
    %513 = vmatpush.bf16.msra.mxu0 0
    %514 = vmatpush.bf16.msra.mxu0 0
    %515 = vmatpush.bf16.msra.mxu0 0
    %516 = vmatpush.bf16.msra.mxu0 0
    %517 = vmatpush.bf16.msra.mxu0 0
    %518 = vmatpush.bf16.msra.mxu0 0
    %519 = vmatpush.bf16.msra.mxu0 0
    %520 = vmatpush.bf16.msra.mxu0 %v511
    %521 = vmatmul.bf16.gmra.mxu0 %v507
    %v522 = vpop.f32.mrf.mxu0
    %v523 = vadd.f32 0.0, %v522
    %v524 = vpop.f32.mrf.mxu0
    %525 = vdwg.mxu0
    %526 = vrot.lane.b32.xlu0 %v257, 96
    %v527 = vpop.permute.xlu0 %526
    %v529 = vsel %vm423, %v497, 0
    %v532 = vsel %vm509, %v527, 0
    %534 = vmatpush.bf16.msra.mxu0 0
    %535 = vmatpush.bf16.msra.mxu0 0
    %536 = vmatpush.bf16.msra.mxu0 0
    %537 = vmatpush.bf16.msra.mxu0 0
    %538 = vmatpush.bf16.msra.mxu0 0
    %539 = vmatpush.bf16.msra.mxu0 0
    %540 = vmatpush.bf16.msra.mxu0 0
    %541 = vmatpush.bf16.msra.mxu0 %v532
    %542 = vmatmul.bf16.gmra.mxu0 %v529
    %v543 = vpop.f32.mrf.mxu0
    %v544 = vadd.f32 0.0, %v543
    %v545 = vpop.f32.mrf.mxu0
    %546 = vdwg.mxu0
    %547 = vrot.lane.b32.xlu0 %v281, 96
    %v548 = vpop.permute.xlu0 %547
    %v550 = vsel %vm423, %v498, 0
    %v553 = vsel %vm509, %v548, 0
    %555 = vmatpush.bf16.msra.mxu0 0
    %556 = vmatpush.bf16.msra.mxu0 0
    %557 = vmatpush.bf16.msra.mxu0 0
    %558 = vmatpush.bf16.msra.mxu0 0
    %559 = vmatpush.bf16.msra.mxu0 0
    %560 = vmatpush.bf16.msra.mxu0 0
    %561 = vmatpush.bf16.msra.mxu0 0
    %562 = vmatpush.bf16.msra.mxu0 %v553
    %563 = vmatmul.bf16.gmra.mxu0 %v550
    %v564 = vpop.f32.mrf.mxu0
    %v565 = vadd.f32 0.0, %v564
    %v566 = vpop.f32.mrf.mxu0
    %567 = vdwg.mxu0
    %568 = vrot.lane.b32.xlu0 %v305, 96
    %v569 = vpop.permute.xlu0 %568
    %v571 = vsel %vm423, %v499, 0
    %v574 = vsel %vm509, %v569, 0
    %576 = vmatpush.bf16.msra.mxu0 0
    %577 = vmatpush.bf16.msra.mxu0 0
    %578 = vmatpush.bf16.msra.mxu0 0
    %579 = vmatpush.bf16.msra.mxu0 0
    %580 = vmatpush.bf16.msra.mxu0 0
    %581 = vmatpush.bf16.msra.mxu0 0
    %582 = vmatpush.bf16.msra.mxu0 0
    %583 = vmatpush.bf16.msra.mxu0 %v574
    %584 = vmatmul.bf16.gmra.mxu0 %v571
    %v585 = vpop.f32.mrf.mxu0
    %v586 = vadd.f32 0.0, %v585
    %v587 = vpop.f32.mrf.mxu0
    %588 = vdwg.mxu0
    %589 = vrot.lane.b32.xlu0 %v329, 96
    %v590 = vpop.permute.xlu0 %589
    %v592 = vsel %vm423, %v500, 0
    %v595 = vsel %vm509, %v590, 0
    %597 = vmatpush.bf16.msra.mxu0 0
    %598 = vmatpush.bf16.msra.mxu0 0
    %599 = vmatpush.bf16.msra.mxu0 0
    %600 = vmatpush.bf16.msra.mxu0 0
    %601 = vmatpush.bf16.msra.mxu0 0
    %602 = vmatpush.bf16.msra.mxu0 0
    %603 = vmatpush.bf16.msra.mxu0 0
    %604 = vmatpush.bf16.msra.mxu0 %v595
    %605 = vmatmul.bf16.gmra.mxu0 %v592
    %v606 = vpop.f32.mrf.mxu0
    %v607 = vadd.f32 0.0, %v606
    %v608 = vpop.f32.mrf.mxu0
    %609 = vdwg.mxu0
    %610 = vrot.lane.b32.xlu0 %v353, 96
    %v611 = vpop.permute.xlu0 %610
    %v613 = vsel %vm423, %v501, 0
    %v616 = vsel %vm509, %v611, 0
    %618 = vmatpush.bf16.msra.mxu0 0
    %619 = vmatpush.bf16.msra.mxu0 0
    %620 = vmatpush.bf16.msra.mxu0 0
    %621 = vmatpush.bf16.msra.mxu0 0
    %622 = vmatpush.bf16.msra.mxu0 0
    %623 = vmatpush.bf16.msra.mxu0 0
    %624 = vmatpush.bf16.msra.mxu0 0
    %625 = vmatpush.bf16.msra.mxu0 %v616
    %626 = vmatmul.bf16.gmra.mxu0 %v613
    %v627 = vpop.f32.mrf.mxu0
    %v628 = vadd.f32 0.0, %v627
    %v629 = vpop.f32.mrf.mxu0
    %630 = vdwg.mxu0
    %631 = vrot.lane.b32.xlu0 %v377, 96
    %v632 = vpop.permute.xlu0 %631
    %v634 = vsel %vm423, %v502, 0
    %v637 = vsel %vm509, %v632, 0
    %639 = vmatpush.bf16.msra.mxu0 0
    %640 = vmatpush.bf16.msra.mxu0 0
    %641 = vmatpush.bf16.msra.mxu0 0
    %642 = vmatpush.bf16.msra.mxu0 0
    %643 = vmatpush.bf16.msra.mxu0 0
    %644 = vmatpush.bf16.msra.mxu0 0
    %645 = vmatpush.bf16.msra.mxu0 0
    %646 = vmatpush.bf16.msra.mxu0 %v637
    %647 = vmatmul.bf16.gmra.mxu0 %v634
    %v648 = vpop.f32.mrf.mxu0
    %v649 = vadd.f32 0.0, %v648
    %v650 = vpop.f32.mrf.mxu0
    %651 = vdwg.mxu0
    %652 = vrot.lane.b32.xlu0 %v401, 96
    %v653 = vpop.permute.xlu0 %652
    %v655 = vsel %vm423, %v503, 0
    %v658 = vsel %vm509, %v653, 0
    %660 = vmatpush.bf16.msra.mxu0 0
    %661 = vmatpush.bf16.msra.mxu0 0
    %662 = vmatpush.bf16.msra.mxu0 0
    %663 = vmatpush.bf16.msra.mxu0 0
    %664 = vmatpush.bf16.msra.mxu0 0
    %665 = vmatpush.bf16.msra.mxu0 0
    %666 = vmatpush.bf16.msra.mxu0 0
    %667 = vmatpush.bf16.msra.mxu0 %v658
    %668 = vmatmul.bf16.gmra.mxu0 %v655
    %v669 = vpop.f32.mrf.mxu0
    %v670 = vadd.f32 0.0, %v669
    %v671 = vpop.f32.mrf.mxu0
    %672 = vdwg.mxu0
    %v673 = vrcp.pop %v474
    %v674 = vrcp.pop %v477
    %v675 = vrcp.pop %v480
    %v676 = vrcp.pop %v483
    %v677 = vrcp.pop %v486
    %v678 = vrcp.pop %v489
    %v679 = vrcp.pop %v492
    %v680 = vrcp.pop %v495
    %v681 = vmul.f32 %v523, %v673
    %v682 = vmul.f32 %v544, %v674
    %v683 = vmul.f32 %v565, %v675
    %v684 = vmul.f32 %v586, %v676
    %v685 = vmul.f32 %v607, %v677
    %v686 = vmul.f32 %v628, %v678
    %v687 = vmul.f32 %v649, %v679
    %v688 = vmul.f32 %v670, %v680
    %v689 = vpack.c.bf16 %v681, %v681
    %v690 = vpack.c.bf16 %v682, %v682
    %v691 = vpack.c.bf16 %v683, %v683
    %v692 = vpack.c.bf16 %v684, %v684
    %v693 = vpack.c.bf16 %v685, %v685
    %v694 = vpack.c.bf16 %v686, %v686
    %v695 = vpack.c.bf16 %v687, %v687
    %v696 = vpack.c.bf16 %v688, %v688
    %v697 = vld [vmem:[%s2] sm:$0xf]
    %v698 = vld [vmem:[%s2 + $0x4] sm:$0xf]
    %v699 = vld [vmem:[%s2 + $0x8] sm:$0xf]
    %v700 = vld [vmem:[%s2 + $0xc] sm:$0xf]
    %v701 = vld [vmem:[%s2 + $0x10] sm:$0xf]
    %v702 = vld [vmem:[%s2 + $0x14] sm:$0xf]
    %v703 = vld [vmem:[%s2 + $0x18] sm:$0xf]
    %v704 = vld [vmem:[%s2 + $0x1c] sm:$0xf]
    %v707 = vunpack.c.l.b16 %v689
    %v708 = vunpack.c.l.b16 %v690
    %v709 = vpack.c.b16 %v708, %v707
    %v712 = vunpack.c.l.b16 %v697
    %v713 = vunpack.c.l.b16 %v698
    %v714 = vpack.c.b16 %v713, %v712
    %v717 = vsel %vm235, %v709, 0
    %719 = vmatpush.bf16.msra.mxu0 0
    %720 = vmatpush.bf16.msra.mxu0 0
    %721 = vmatpush.bf16.msra.mxu0 0
    %722 = vmatpush.bf16.msra.mxu0 0
    %723 = vmatpush.bf16.msra.mxu0 0
    %724 = vmatpush.bf16.msra.mxu0 0
    %725 = vmatpush.bf16.msra.mxu0 0
    %726 = vmatpush.bf16.msra.mxu0 %v714
    %727 = vmatmul.bf16.gmra.mxu0 %v717
    %v728 = vpop.f32.mrf.mxu0
    %v729 = vadd.f32 0.0, %v728
    %v730 = vpop.f32.mrf.mxu0
    %v731 = vadd.f32 0.0, %v730
    %732 = vdwg.mxu0
    %v735 = vunpack.c.l.b16 %v691
    %v736 = vunpack.c.l.b16 %v692
    %v737 = vpack.c.b16 %v736, %v735
    %v740 = vunpack.c.l.b16 %v699
    %v741 = vunpack.c.l.b16 %v700
    %v742 = vpack.c.b16 %v741, %v740
    %v745 = vsel %vm235, %v737, 0
    %747 = vmatpush.bf16.msra.mxu0 0
    %748 = vmatpush.bf16.msra.mxu0 0
    %749 = vmatpush.bf16.msra.mxu0 0
    %750 = vmatpush.bf16.msra.mxu0 0
    %751 = vmatpush.bf16.msra.mxu0 0
    %752 = vmatpush.bf16.msra.mxu0 0
    %753 = vmatpush.bf16.msra.mxu0 0
    %754 = vmatpush.bf16.msra.mxu0 %v742
    %755 = vmatmul.bf16.gmra.mxu0 %v745
    %v756 = vpop.f32.mrf.mxu0
    %v757 = vadd.f32 0.0, %v756
    %v758 = vpop.f32.mrf.mxu0
    %v759 = vadd.f32 0.0, %v758
    %760 = vdwg.mxu0
    %v763 = vunpack.c.l.b16 %v693
    %v764 = vunpack.c.l.b16 %v694
    %v765 = vpack.c.b16 %v764, %v763
    %v768 = vunpack.c.l.b16 %v701
    %v769 = vunpack.c.l.b16 %v702
    %v770 = vpack.c.b16 %v769, %v768
    %v773 = vsel %vm235, %v765, 0
    %775 = vmatpush.bf16.msra.mxu0 0
    %776 = vmatpush.bf16.msra.mxu0 0
    %777 = vmatpush.bf16.msra.mxu0 0
    %778 = vmatpush.bf16.msra.mxu0 0
    %779 = vmatpush.bf16.msra.mxu0 0
    %780 = vmatpush.bf16.msra.mxu0 0
    %781 = vmatpush.bf16.msra.mxu0 0
    %782 = vmatpush.bf16.msra.mxu0 %v770
    %783 = vmatmul.bf16.gmra.mxu0 %v773
    %v784 = vpop.f32.mrf.mxu0
    %v785 = vadd.f32 0.0, %v784
    %v786 = vpop.f32.mrf.mxu0
    %v787 = vadd.f32 0.0, %v786
    %788 = vdwg.mxu0
    %v791 = vunpack.c.l.b16 %v695
    %v792 = vunpack.c.l.b16 %v696
    %v793 = vpack.c.b16 %v792, %v791
    %v796 = vunpack.c.l.b16 %v703
    %v797 = vunpack.c.l.b16 %v704
    %v798 = vpack.c.b16 %v797, %v796
    %v801 = vsel %vm235, %v793, 0
    %803 = vmatpush.bf16.msra.mxu0 0
    %804 = vmatpush.bf16.msra.mxu0 0
    %805 = vmatpush.bf16.msra.mxu0 0
    %806 = vmatpush.bf16.msra.mxu0 0
    %807 = vmatpush.bf16.msra.mxu0 0
    %808 = vmatpush.bf16.msra.mxu0 0
    %809 = vmatpush.bf16.msra.mxu0 0
    %810 = vmatpush.bf16.msra.mxu0 %v798
    %811 = vmatmul.bf16.gmra.mxu0 %v801
    %v812 = vpop.f32.mrf.mxu0
    %v813 = vadd.f32 0.0, %v812
    %v814 = vpop.f32.mrf.mxu0
    %v815 = vadd.f32 0.0, %v814
    %816 = vdwg.mxu0
    %v817 = vsel %vm84, %v729, 0.0
    %v818 = vsel %vm84, %v757, 0.0
    %v819 = vadd.f32 %v817, %v818
    %v820 = vsel %vm84, %v785, 0.0
    %v821 = vadd.f32 %v819, %v820
    %v822 = vsel %vm84, %v813, 0.0
    %v823 = vadd.f32 %v821, %v822
    %v824 = vsel %vm84, %v731, 0.0
    %v825 = vsel %vm84, %v759, 0.0
    %v826 = vadd.f32 %v824, %v825
    %v827 = vsel %vm84, %v787, 0.0
    %v828 = vadd.f32 %v826, %v827
    %v829 = vsel %vm84, %v815, 0.0
    %v830 = vadd.f32 %v828, %v829
    %v831 = vld [vmem:[%s3] sm:$0x1]
    %v833 = vperm.slane %v831, 0
    %v835 = vadd.f32 %v823, %v833
    %v836 = vadd.f32 %v830, %v833
    %837 = vst.msk [vmem:[#allocation2] sm:$0xff] %vm84, %v835
    %838 = vst.msk [vmem:[#allocation2 + $0x8] sm:$0xff] %vm84, %v836
    // Predicated region
    $region18: #{tpu_custom_call.1} parent=1 // pred_check
      _
    $region19: #{tpu_custom_call.1} parent=1 // pred_check_branch
      %840 = sbr.rel (0) target = $region21
    $region20: #{tpu_custom_call.1} parent=1 // pred_region
      %842 = vsyncadd [#allocation3], 0
      %s843 = sshll.u32 [#allocation2], 4
      %s844 = int_to_ptr.vmem [resolvable:$true] %s843
      %s845 = sshll.u32 %s4, 4
      %s846 = int_to_ptr.hbm [resolvable:$true] %s845
      %851 = dma.vmem_to_hbm [thread:$0]  %s844, 256, %s846, [#allocation3], 128, 128, 8
    $region21: #{tpu_custom_call.1} parent=1 // pred_fallthru
      _
    // Predicated region
    $region22: #{tpu_custom_call.1} parent=1 // pred_check
      _
    $region23: #{tpu_custom_call.1} parent=1 // pred_check_branch
      %853 = sbr.rel (0) target = $region25
    $region24: #{tpu_custom_call.1} parent=1 // pred_region
      %855 = dma.done [#allocation3], 256
    $region25: #{tpu_custom_call.1} parent=1 // pred_fallthru
      _
    %856 = vsyncpa [#allocation3], 1

</llo_original>
